<compile_context>
chip_gen: v6e
topology: v6e:2x2x1
jax: 0.10.0
libtpu: 0.0.40
codegen_flags: <defaults>
</compile_context>

<pallas_src>
import functools
import math

import jax
import jax.numpy as jnp
from jax import lax
from jax.experimental import pallas as pl
from jax.experimental.pallas import tpu as pltpu

LN_EPS = 1e-5  # torch.nn.LayerNorm default


def _round_up(n, m):
    return ((n + m - 1) // m) * m


def _pad2(a, rows, cols):
    a = jnp.asarray(a, jnp.float32)
    return jnp.pad(a, ((0, rows - a.shape[0]), (0, cols - a.shape[1])))


def _pick_vmem_limit():
    """Scoped-VMEM request: <= 3/4 of physical VMEM, never more than 64 MiB.

    v7x has only 64 MiB/TC physical (a hard 64 MiB request is unsafe there);
    v5e/v6e have 128 MiB.  Falls back to a conservative 32 MiB if the query
    is unavailable.
    """
    try:
        cap = int(pltpu.get_tpu_info().vmem_capacity_bytes)
        return min(cap * 3 // 4, 64 * 1024 * 1024)
    except Exception:
        return 32 * 1024 * 1024


def _t_matrix(a, b, c, d, p):
    """(4P,4P) matrix T so that right-multiplying the packed state [z|h]
    (z and h each 2P = real|imag lanes) applies the per-channel 2x2 transition
    [[a, b], [c, d]] on the MXU."""
    two_p = 2 * p
    a2, b2, c2, d2 = (jnp.tile(v, 2) for v in (a, b, c, d))
    idx = jnp.arange(two_p)
    t = jnp.zeros((4 * p, 4 * p), jnp.float32)
    t = t.at[idx, idx].set(a2)                      # z' += a * z
    t = t.at[idx + two_p, idx].set(b2)              # z' += b * h
    t = t.at[idx, idx + two_p].set(c2)              # h' += c * z
    t = t.at[idx + two_p, idx + two_p].set(d2)      # h' += d * h
    return t


def _linoss_block_kernel(x_ref, bmat_ref, cseed_ref, t_ref, cmat_ref, d_ref,
                         wmat_ref, bias_ref, o_ref, carry_ref, *,
                         h_true, hp, block_l, n_steps, approx_gelu, bf16_matmul):
    f32 = jnp.float32
    blk = pl.program_id(0)

    @pl.when(blk == 0)
    def _():
        carry_ref[...] = jnp.zeros_like(carry_ref)

    x = x_ref[...]                                   # (block_l, Hp); padded cols are 0

    # ---- LayerNorm (no affine); two-pass variance, corrected for zero pad cols ----
    inv_h = 1.0 / h_true
    mean = jnp.sum(x, axis=-1, keepdims=True) * inv_h
    xc = x - mean
    var = (jnp.sum(xc * xc, axis=-1, keepdims=True)
           - (hp - h_true) * mean * mean) * inv_h
    xn = xc * lax.rsqrt(var + LN_EPS)                # pad cols only touch zero weight rows

    # ---- packed scan seed [z_re|z_im|h_re|h_im] from one fused MXU push ----
    bu2 = jnp.dot(xn, bmat_ref[...], preferred_element_type=f32)   # (block_l, 4P) = [Bu|Bu]
    s = cseed_ref[...] * bu2                         # z = m11*step*Bu, h = m21*step*Bu

    # ---- fold the cross-block carry (already M @ s_last_prev) into row 0 ----
    row = lax.broadcasted_iota(jnp.int32, s.shape, 0)
    s = s + jnp.where(row == 0, carry_ref[...], 0.0)

    # ---- Hillis-Steele doubling scan; M^(2^k) applied via T_k on the MXU ----
    shift = 1
    for k in range(n_steps):
        s_sh = jnp.where(row >= shift, pltpu.roll(s, shift=shift, axis=0), 0.0)
        s = s + jnp.dot(s_sh, t_ref[k], preferred_element_type=f32)
        shift *= 2

    # ---- carry for the next block: M @ s[last row] (skipped on the final block) ----
    @pl.when(blk + 1 < pl.num_programs(0))
    def _():
        last = jnp.where(row == block_l - 1, s, 0.0)
        carry_ref[...] = jnp.sum(
            jnp.dot(last, t_ref[0], preferred_element_type=f32),
            axis=0, keepdims=True)

    # ---- readout real(ys @ C^T) + D*u, GELU, fused GLU, residual ----
    ssm = jnp.dot(s, cmat_ref[...], preferred_element_type=f32) + xn * d_ref[...]
    if approx_gelu:
        g = jax.nn.gelu(ssm, approximate=True)       # tanh form -> EUP (opt-in)
    else:
        g = 0.5 * ssm * (1.0 + lax.erf(ssm * (1.0 / math.sqrt(2.0))))  # torch-exact
    gl = g.astype(jnp.bfloat16) if bf16_matmul else g
    y = jnp.dot(gl, wmat_ref[...], preferred_element_type=f32) + bias_ref[...]
    y1 = y[:, :hp]
    y2 = y[:, hp:]
    o_ref[...] = x + y1 * jax.nn.sigmoid(y2)


def make_linoss_block_fn(params, *, block_l=512, approx_gelu=False,
                         bf16_matmul=False):
    """One-time (per parameter set) packing; returns a jitted (L,H)->(L,H) fn."""
    f32 = jnp.float32
    a_relu = jnp.maximum(jnp.asarray(params["A_diag"], f32), 0.0)
    step = jax.nn.sigmoid(jnp.asarray(params["steps"], f32))
    p = a_relu.shape[0]
    br = jnp.asarray(params["B"][..., 0], f32)       # (P, H)
    bi = jnp.asarray(params["B"][..., 1], f32)
    cr = jnp.asarray(params["C"][..., 0], f32)       # (H, P)
    ci = jnp.asarray(params["C"][..., 1], f32)
    h = br.shape[1]
    hp = _round_up(h, 128)
    two_p, four_p = 2 * p, 4 * p

    # IM-discretization coefficients (host-side; removed from the kernel prologue).
    s2a = step * step * a_relu
    schur = 1.0 / (1.0 + s2a)
    m11 = 1.0 - s2a * schur
    m12 = -step * a_relu * schur
    m21 = step * schur
    m22 = schur

    # Seed coefficients with `step` folded in: z = m11*step*Bu, h = m21*step*Bu.
    cseed = jnp.concatenate(
        [jnp.tile(m11 * step, 2), jnp.tile(m21 * step, 2)]).reshape(1, four_p)

    # B^T (real|imag), duplicated so one matmul yields the packed [Bu|Bu] layout.
    bt = jnp.concatenate([br.T, bi.T], axis=1)                        # (H, 2P)
    bmat = _pad2(jnp.concatenate([bt, bt], axis=1), hp, four_p)       # (Hp, 4P)

    # Readout uses only the h-half (ys): real(ys @ C^T) = ys_r @ Cr^T - ys_i @ Ci^T.
    cmat = _pad2(jnp.concatenate(
        [jnp.zeros((two_p, h), f32), cr.T, -ci.T], axis=0), four_p, hp)  # (4P, Hp)

    d = _pad2(jnp.asarray(params["D"], f32).reshape(1, h), 1, hp)
    wmat = jnp.concatenate(
        [_pad2(jnp.asarray(params["W1"], f32).T, hp, hp),
         _pad2(jnp.asarray(params["W2"], f32).T, hp, hp)], axis=1)    # (Hp, 2Hp)
    if bf16_matmul:
        wmat = wmat.astype(jnp.bfloat16)
    bias = jnp.concatenate(
        [_pad2(jnp.asarray(params["b1"], f32).reshape(1, h), 1, hp),
         _pad2(jnp.asarray(params["b2"], f32).reshape(1, h), 1, hp)], axis=1)

    # M^(2^k) transition matrices for the doubling scan (enough for block_l rows).
    block_l = max(8, _round_up(int(block_l), 8))
    n_steps_max = max((block_l - 1).bit_length(), 1)
    a_, b_, c_, d_ = m11, m12, m21, m22
    tmats = []
    for _ in range(n_steps_max):
        tmats.append(_t_matrix(a_, b_, c_, d_, p))
        a_, b_, c_, d_ = (a_ * a_ + b_ * c_, a_ * b_ + b_ * d_,
                          c_ * a_ + d_ * c_, c_ * b_ + d_ * d_)
    tmats = jnp.stack(tmats)                                          # (n_steps_max, 4P, 4P)

    vmem_limit = _pick_vmem_limit()

    def fwd(x):
        l, h_in = x.shape
        assert h_in == h, "hidden size mismatch with prepared parameters"
        if l <= block_l:
            bl, n_blocks = _round_up(max(l, 1), 8), 1
        else:
            bl = block_l
            n_blocks = _round_up(l, bl) // bl
        lp = bl * n_blocks
        n_steps = (bl - 1).bit_length()
        xp = _pad2(x, lp, hp)

        kernel = functools.partial(
            _linoss_block_kernel, h_true=float(h), hp=hp, block_l=bl,
            n_steps=n_steps, approx_gelu=approx_gelu, bf16_matmul=bf16_matmul)
        vmem = pl.BlockSpec(memory_space=pltpu.MemorySpace.VMEM)
        out = pl.pallas_call(
            kernel,
            out_shape=jax.ShapeDtypeStruct((lp, hp), f32),
            grid=(n_blocks,),
            in_specs=[pl.BlockSpec((bl, hp), lambda i: (i, 0))] + [vmem] * 7,
            out_specs=pl.BlockSpec((bl, hp), lambda i: (i, 0)),
            scratch_shapes=[pltpu.VMEM((1, four_p), jnp.float32)],
            compiler_params=pltpu.CompilerParams(
                dimension_semantics=("arbitrary",),
                vmem_limit_bytes=vmem_limit),
        )(xp, bmat, cseed, tmats, cmat, d, wmat, bias)
        return out[:l, :h]

    return jax.jit(fwd)


# ---------------- pure-JAX sequential reference (for verification) ----------------
def ref_forward(x, params):
    a_relu = jnp.maximum(params["A_diag"], 0.0)
    step = jax.nn.sigmoid(params["steps"])
    br, bi = params["B"][..., 0], params["B"][..., 1]
    cr, ci = params["C"][..., 0], params["C"][..., 1]

    mean = x.mean(-1, keepdims=True)
    var = ((x - mean) ** 2).mean(-1, keepdims=True)
    xn = (x - mean) / jnp.sqrt(var + LN_EPS)

    bur = xn @ br.T
    bui = xn @ bi.T
    schur = 1.0 / (1.0 + step ** 2 * a_relu)
    m11 = 1.0 - step ** 2 * a_relu * schur
    m12 = -step * a_relu * schur
    m21 = step * schur
    m22 = schur
    f1r, f1i = m11 * bur * step, m11 * bui * step
    f2r, f2i = m21 * bur * step, m21 * bui * step

    def scan_f(carry, f):
        zr, zi, hr, hi = carry
        g1r, g1i, g2r, g2i = f
        nzr = m11 * zr + m12 * hr + g1r
        nzi = m11 * zi + m12 * hi + g1i
        nhr = m21 * zr + m22 * hr + g2r
        nhi = m21 * zi + m22 * hi + g2i
        return (nzr, nzi, nhr, nhi), (nhr, nhi)

    z0 = jnp.zeros_like(f1r[0])
    _, (ysr, ysi) = lax.scan(scan_f, (z0, z0, z0, z0), (f1r, f1i, f2r, f2i))
    ssm = ysr @ cr.T - ysi @ ci.T + xn * params["D"]
    g = 0.5 * ssm * (1.0 + lax.erf(ssm / jnp.sqrt(2.0)))
    y1 = g @ params["W1"].T + params["b1"]
    y2 = g @ params["W2"].T + params["b2"]
    return x + y1 * jax.nn.sigmoid(y2)


if __name__ == "__main__":
    P, H = 16, 32
    key = jax.random.PRNGKey(0)
    ks = jax.random.split(key, 11)
    params = {
        "A_diag": jax.random.uniform(ks[0], (P,)),
        "B": jax.random.uniform(ks[1], (P, H, 2), minval=-1.0, maxval=1.0) / math.sqrt(H),
        "C": jax.random.uniform(ks[2], (H, P, 2), minval=-1.0, maxval=1.0) / math.sqrt(P),
        "D": jax.random.normal(ks[3], (H,)),
        "steps": jax.random.uniform(ks[4], (P,)),
        "W1": jax.random.normal(ks[5], (H, H)) / math.sqrt(H),
        "b1": 0.01 * jax.random.normal(ks[6], (H,)),
        "W2": jax.random.normal(ks[7], (H, H)) / math.sqrt(H),
        "b2": 0.01 * jax.random.normal(ks[8], (H,)),
    }

    # 1) single-block path (L fits in one block; exercises L- and H-padding).
    L1 = 12
    x1 = jax.random.normal(ks[9], (L1, H), jnp.float32)
    fwd = make_linoss_block_fn(params)                 # exact semantics (flags off)
    out1 = jax.block_until_ready(fwd(x1))
    ref1 = ref_forward(x1, params)
    assert out1.shape == (L1, H) and out1.dtype == jnp.float32
    err1 = float(jnp.max(jnp.abs(out1 - ref1)))
    assert jnp.allclose(out1, ref1, atol=1e-4, rtol=1e-4), f"single-block max err {err1}"

    # 2) multi-block grid with the cross-block scan carry (block_l=16 -> 4 blocks).
    L2 = 50
    x2 = jax.random.normal(ks[10], (L2, H), jnp.float32)
    fwd_small_blocks = make_linoss_block_fn(params, block_l=16)
    out2 = jax.block_until_ready(fwd_small_blocks(x2))
    ref2 = ref_forward(x2, params)
    err2 = float(jnp.max(jnp.abs(out2 - ref2)))
    assert jnp.allclose(out2, ref2, atol=1e-4, rtol=1e-4), f"multi-block max err {err2}"

    print("KERNEL_OK")
</pallas_src>

<mosaic_0001>
module attributes {stable_mosaic.version = 11 : i64} {
  func.func @_linoss_block_kernel(%arg0: i32, %arg1: memref<16x128xf32, #tpu.memory_space<vmem>>, %arg2: memref<128x64xf32, #tpu.memory_space<vmem>>, %arg3: memref<1x64xf32, #tpu.memory_space<vmem>>, %arg4: memref<9x64x64xf32, #tpu.memory_space<vmem>>, %arg5: memref<64x128xf32, #tpu.memory_space<vmem>>, %arg6: memref<1x128xf32, #tpu.memory_space<vmem>>, %arg7: memref<128x256xf32, #tpu.memory_space<vmem>>, %arg8: memref<1x256xf32, #tpu.memory_space<vmem>>, %arg9: memref<16x128xf32, #tpu.memory_space<vmem>>, %arg10: memref<1x64xf32, #tpu.memory_space<vmem>>) attributes {dimension_semantics = [#tpu.dimension_semantics<arbitrary>], iteration_bounds = array<i64: 1>, scalar_prefetch = 0 : i64, scratch_operands = 1 : i64, tpu.core_type = #tpu.core_type<tc>, window_params = [{transform_indices = @transform_0, window_bounds = array<i64: 16, 128>}, {pipeline_mode = #tpu.pipeline_mode<synchronous>, transform_indices = @transform_1, window_bounds = array<i64: 128, 64>}, {pipeline_mode = #tpu.pipeline_mode<synchronous>, transform_indices = @transform_2, window_bounds = array<i64: 1, 64>}, {pipeline_mode = #tpu.pipeline_mode<synchronous>, transform_indices = @transform_3, window_bounds = array<i64: 9, 64, 64>}, {pipeline_mode = #tpu.pipeline_mode<synchronous>, transform_indices = @transform_4, window_bounds = array<i64: 64, 128>}, {pipeline_mode = #tpu.pipeline_mode<synchronous>, transform_indices = @transform_5, window_bounds = array<i64: 1, 128>}, {pipeline_mode = #tpu.pipeline_mode<synchronous>, transform_indices = @transform_6, window_bounds = array<i64: 128, 256>}, {pipeline_mode = #tpu.pipeline_mode<synchronous>, transform_indices = @transform_7, window_bounds = array<i64: 1, 256>}, {transform_indices = @transform_8, window_bounds = array<i64: 16, 128>}]} {
    %c0_i32 = arith.constant 0 : i32
    %0 = arith.cmpi eq, %arg0, %c0_i32 : i32
    %1 = arith.extui %0 : i1 to i32
    %c0_i32_0 = arith.constant 0 : i32
    %2 = arith.cmpi ne, %1, %c0_i32_0 : i32
    scf.if %2 {
      %cst_56 = arith.constant 0.000000e+00 : f32
      %107 = vector.broadcast %cst_56 : f32 to vector<1x64xf32>
      %c0_57 = arith.constant 0 : index
      %c0_58 = arith.constant 0 : index
      %108 = vector.load %arg10[%c0_57, %c0_58] : memref<1x64xf32, #tpu.memory_space<vmem>>, vector<1x64xf32>
      tpu.vector_store %arg10[%c0_57, %c0_58], %107 {strides = array<i32>} : memref<1x64xf32, #tpu.memory_space<vmem>>, vector<1x64xf32>,
    } else {
    }
    %c0 = arith.constant 0 : index
    %c0_1 = arith.constant 0 : index
    %3 = vector.load %arg1[%c0, %c0_1] : memref<16x128xf32, #tpu.memory_space<vmem>>, vector<16x128xf32>
    %cst = arith.constant dense<0.000000e+00> : vector<16xf32>
    %4 = vector.multi_reduction <add>, %3, %cst [1] : vector<16x128xf32> to vector<16xf32>
    %5 = vector.shape_cast %4 : vector<16xf32> to vector<16x1xf32>
    %cst_2 = arith.constant 3.125000e-02 : f32
    %6 = vector.broadcast %cst_2 : f32 to vector<16x1xf32>
    %7 = arith.mulf %5, %6 : vector<16x1xf32>
    %8 = vector.broadcast %7 : vector<16x1xf32> to vector<16x128xf32>
    %9 = arith.subf %3, %8 : vector<16x128xf32>
    %10 = arith.mulf %9, %9 : vector<16x128xf32>
    %cst_3 = arith.constant dense<0.000000e+00> : vector<16xf32>
    %11 = vector.multi_reduction <add>, %10, %cst_3 [1] : vector<16x128xf32> to vector<16xf32>
    %12 = vector.shape_cast %11 : vector<16xf32> to vector<16x1xf32>
    %cst_4 = arith.constant 9.600000e+01 : f32
    %13 = vector.broadcast %cst_4 : f32 to vector<16x1xf32>
    %14 = arith.mulf %13, %7 : vector<16x1xf32>
    %15 = arith.mulf %14, %7 : vector<16x1xf32>
    %16 = arith.subf %12, %15 : vector<16x1xf32>
    %cst_5 = arith.constant 3.125000e-02 : f32
    %17 = vector.broadcast %cst_5 : f32 to vector<16x1xf32>
    %18 = arith.mulf %16, %17 : vector<16x1xf32>
    %cst_6 = arith.constant 9.99999974E-6 : f32
    %19 = vector.broadcast %cst_6 : f32 to vector<16x1xf32>
    %20 = arith.addf %18, %19 : vector<16x1xf32>
    %21 = math.rsqrt %20 : vector<16x1xf32>
    %22 = vector.broadcast %21 : vector<16x1xf32> to vector<16x128xf32>
    %23 = arith.mulf %9, %22 : vector<16x128xf32>
    %c0_7 = arith.constant 0 : index
    %c0_8 = arith.constant 0 : index
    %24 = vector.load %arg2[%c0_7, %c0_8] : memref<128x64xf32, #tpu.memory_space<vmem>>, vector<128x64xf32>
    %cst_9 = arith.constant dense<0.000000e+00> : vector<16x64xf32>
    %25 = tpu.matmul %23, %24, %cst_9 {dimension_numbers = #tpu.dot_dimension_numbers<[1], [0], [0], [1], [0, 0, 1, 1], [], []>} : vector<16x128xf32>, vector<128x64xf32>, vector<16x64xf32> -> vector<16x64xf32>
    %c0_10 = arith.constant 0 : index
    %c0_11 = arith.constant 0 : index
    %26 = vector.load %arg3[%c0_10, %c0_11] : memref<1x64xf32, #tpu.memory_space<vmem>>, vector<1x64xf32>
    %27 = vector.broadcast %26 : vector<1x64xf32> to vector<16x64xf32>
    %28 = arith.mulf %27, %25 : vector<16x64xf32>
    %29 = tpu.iota {dimensions = array<i32: 0>} : vector<16x64xi32>
    %c0_i32_12 = arith.constant 0 : i32
    %30 = vector.broadcast %c0_i32_12 : i32 to vector<16x64xi32>
    %31 = arith.cmpi eq, %29, %30 : vector<16x64xi32>
    %c0_13 = arith.constant 0 : index
    %c0_14 = arith.constant 0 : index
    %32 = vector.load %arg10[%c0_13, %c0_14] : memref<1x64xf32, #tpu.memory_space<vmem>>, vector<1x64xf32>
    %cst_15 = arith.constant 0.000000e+00 : f32
    %33 = vector.shape_cast %32 : vector<1x64xf32> to vector<1x64xf32>
    %34 = vector.broadcast %33 : vector<1x64xf32> to vector<16x64xf32>
    %35 = vector.broadcast %cst_15 : f32 to vector<16x64xf32>
    %36 = arith.select %31, %34, %35 : vector<16x64xi1>, vector<16x64xf32>
    %37 = arith.addf %28, %36 : vector<16x64xf32>
    %c1_i32 = arith.constant 1 : i32
    %38 = vector.broadcast %c1_i32 : i32 to vector<16x64xi32>
    %39 = arith.cmpi sge, %29, %38 : vector<16x64xi32>
    %c1_i32_16 = arith.constant 1 : i32
    %40 = tpu.dynamic_rotate %37 by %c1_i32_16 dim 0 : vector<16x64xf32>, i32 -> vector<16x64xf32>
    %cst_17 = arith.constant 0.000000e+00 : f32
    %41 = vector.broadcast %cst_17 : f32 to vector<16x64xf32>
    %42 = arith.select %39, %40, %41 : vector<16x64xi1>, vector<16x64xf32>
    %c0_18 = arith.constant 0 : index
    %c0_19 = arith.constant 0 : index
    %c0_20 = arith.constant 0 : index
    %43 = vector.load %arg4[%c0_18, %c0_19, %c0_20] : memref<9x64x64xf32, #tpu.memory_space<vmem>>, vector<1x64x64xf32>
    %44 = vector.shape_cast %43 : vector<1x64x64xf32> to vector<64x64xf32>
    %cst_21 = arith.constant dense<0.000000e+00> : vector<16x64xf32>
    %45 = tpu.matmul %42, %44, %cst_21 {dimension_numbers = #tpu.dot_dimension_numbers<[1], [0], [0], [1], [0, 0, 1, 1], [], []>} : vector<16x64xf32>, vector<64x64xf32>, vector<16x64xf32> -> vector<16x64xf32>
    %46 = arith.addf %37, %45 : vector<16x64xf32>
    %c2_i32 = arith.constant 2 : i32
    %47 = vector.broadcast %c2_i32 : i32 to vector<16x64xi32>
    %48 = arith.cmpi sge, %29, %47 : vector<16x64xi32>
    %c2_i32_22 = arith.constant 2 : i32
    %49 = tpu.dynamic_rotate %46 by %c2_i32_22 dim 0 : vector<16x64xf32>, i32 -> vector<16x64xf32>
    %cst_23 = arith.constant 0.000000e+00 : f32
    %50 = vector.broadcast %cst_23 : f32 to vector<16x64xf32>
    %51 = arith.select %48, %49, %50 : vector<16x64xi1>, vector<16x64xf32>
    %c1 = arith.constant 1 : index
    %c0_24 = arith.constant 0 : index
    %c0_25 = arith.constant 0 : index
    %52 = vector.load %arg4[%c1, %c0_24, %c0_25] : memref<9x64x64xf32, #tpu.memory_space<vmem>>, vector<1x64x64xf32>
    %53 = vector.shape_cast %52 : vector<1x64x64xf32> to vector<64x64xf32>
    %cst_26 = arith.constant dense<0.000000e+00> : vector<16x64xf32>
    %54 = tpu.matmul %51, %53, %cst_26 {dimension_numbers = #tpu.dot_dimension_numbers<[1], [0], [0], [1], [0, 0, 1, 1], [], []>} : vector<16x64xf32>, vector<64x64xf32>, vector<16x64xf32> -> vector<16x64xf32>
    %55 = arith.addf %46, %54 : vector<16x64xf32>
    %c4_i32 = arith.constant 4 : i32
    %56 = vector.broadcast %c4_i32 : i32 to vector<16x64xi32>
    %57 = arith.cmpi sge, %29, %56 : vector<16x64xi32>
    %c4_i32_27 = arith.constant 4 : i32
    %58 = tpu.dynamic_rotate %55 by %c4_i32_27 dim 0 : vector<16x64xf32>, i32 -> vector<16x64xf32>
    %cst_28 = arith.constant 0.000000e+00 : f32
    %59 = vector.broadcast %cst_28 : f32 to vector<16x64xf32>
    %60 = arith.select %57, %58, %59 : vector<16x64xi1>, vector<16x64xf32>
    %c2 = arith.constant 2 : index
    %c0_29 = arith.constant 0 : index
    %c0_30 = arith.constant 0 : index
    %61 = vector.load %arg4[%c2, %c0_29, %c0_30] : memref<9x64x64xf32, #tpu.memory_space<vmem>>, vector<1x64x64xf32>
    %62 = vector.shape_cast %61 : vector<1x64x64xf32> to vector<64x64xf32>
    %cst_31 = arith.constant dense<0.000000e+00> : vector<16x64xf32>
    %63 = tpu.matmul %60, %62, %cst_31 {dimension_numbers = #tpu.dot_dimension_numbers<[1], [0], [0], [1], [0, 0, 1, 1], [], []>} : vector<16x64xf32>, vector<64x64xf32>, vector<16x64xf32> -> vector<16x64xf32>
    %64 = arith.addf %55, %63 : vector<16x64xf32>
    %c8_i32 = arith.constant 8 : i32
    %65 = vector.broadcast %c8_i32 : i32 to vector<16x64xi32>
    %66 = arith.cmpi sge, %29, %65 : vector<16x64xi32>
    %c8_i32_32 = arith.constant 8 : i32
    %67 = tpu.dynamic_rotate %64 by %c8_i32_32 dim 0 : vector<16x64xf32>, i32 -> vector<16x64xf32>
    %cst_33 = arith.constant 0.000000e+00 : f32
    %68 = vector.broadcast %cst_33 : f32 to vector<16x64xf32>
    %69 = arith.select %66, %67, %68 : vector<16x64xi1>, vector<16x64xf32>
    %c3 = arith.constant 3 : index
    %c0_34 = arith.constant 0 : index
    %c0_35 = arith.constant 0 : index
    %70 = vector.load %arg4[%c3, %c0_34, %c0_35] : memref<9x64x64xf32, #tpu.memory_space<vmem>>, vector<1x64x64xf32>
    %71 = vector.shape_cast %70 : vector<1x64x64xf32> to vector<64x64xf32>
    %cst_36 = arith.constant dense<0.000000e+00> : vector<16x64xf32>
    %72 = tpu.matmul %69, %71, %cst_36 {dimension_numbers = #tpu.dot_dimension_numbers<[1], [0], [0], [1], [0, 0, 1, 1], [], []>} : vector<16x64xf32>, vector<64x64xf32>, vector<16x64xf32> -> vector<16x64xf32>
    %73 = arith.addf %64, %72 : vector<16x64xf32>
    %c1_i32_37 = arith.constant 1 : i32
    %74 = arith.addi %arg0, %c1_i32_37 : i32
    %c1_i32_38 = arith.constant 1 : i32
    %75 = arith.cmpi slt, %74, %c1_i32_38 : i32
    %76 = arith.extui %75 : i1 to i32
    %c0_i32_39 = arith.constant 0 : i32
    %77 = arith.cmpi ne, %76, %c0_i32_39 : i32
    scf.if %77 {
      %c15_i32 = arith.constant 15 : i32
      %107 = vector.broadcast %c15_i32 : i32 to vector<16x64xi32>
      %108 = arith.cmpi eq, %29, %107 : vector<16x64xi32>
      %cst_56 = arith.constant 0.000000e+00 : f32
      %109 = vector.broadcast %cst_56 : f32 to vector<16x64xf32>
      %110 = arith.select %108, %73, %109 : vector<16x64xi1>, vector<16x64xf32>
      %c0_57 = arith.constant 0 : index
      %c0_58 = arith.constant 0 : index
      %c0_59 = arith.constant 0 : index
      %111 = vector.load %arg4[%c0_57, %c0_58, %c0_59] : memref<9x64x64xf32, #tpu.memory_space<vmem>>, vector<1x64x64xf32>
      %112 = vector.shape_cast %111 : vector<1x64x64xf32> to vector<64x64xf32>
      %cst_60 = arith.constant dense<0.000000e+00> : vector<16x64xf32>
      %113 = tpu.matmul %110, %112, %cst_60 {dimension_numbers = #tpu.dot_dimension_numbers<[1], [0], [0], [1], [0, 0, 1, 1], [], []>} : vector<16x64xf32>, vector<64x64xf32>, vector<16x64xf32> -> vector<16x64xf32>
      %cst_61 = arith.constant dense<0.000000e+00> : vector<64xf32>
      %114 = vector.multi_reduction <add>, %113, %cst_61 [0] : vector<16x64xf32> to vector<64xf32>
      %115 = vector.shape_cast %114 : vector<64xf32> to vector<1x64xf32>
      %c0_62 = arith.constant 0 : index
      %c0_63 = arith.constant 0 : index
      %116 = vector.load %arg10[%c0_62, %c0_63] : memref<1x64xf32, #tpu.memory_space<vmem>>, vector<1x64xf32>
      tpu.vector_store %arg10[%c0_62, %c0_63], %115 {strides = array<i32>} : memref<1x64xf32, #tpu.memory_space<vmem>>, vector<1x64xf32>,
    } else {
    }
    %c0_40 = arith.constant 0 : index
    %c0_41 = arith.constant 0 : index
    %78 = vector.load %arg5[%c0_40, %c0_41] : memref<64x128xf32, #tpu.memory_space<vmem>>, vector<64x128xf32>
    %cst_42 = arith.constant dense<0.000000e+00> : vector<16x128xf32>
    %79 = tpu.matmul %73, %78, %cst_42 {dimension_numbers = #tpu.dot_dimension_numbers<[1], [0], [0], [1], [0, 0, 1, 1], [], []>} : vector<16x64xf32>, vector<64x128xf32>, vector<16x128xf32> -> vector<16x128xf32>
    %c0_43 = arith.constant 0 : index
    %c0_44 = arith.constant 0 : index
    %80 = vector.load %arg6[%c0_43, %c0_44] : memref<1x128xf32, #tpu.memory_space<vmem>>, vector<1x128xf32>
    %81 = vector.broadcast %80 : vector<1x128xf32> to vector<16x128xf32>
    %82 = arith.mulf %23, %81 : vector<16x128xf32>
    %83 = arith.addf %79, %82 : vector<16x128xf32>
    %cst_45 = arith.constant 5.000000e-01 : f32
    %84 = vector.broadcast %cst_45 : f32 to vector<16x128xf32>
    %85 = arith.mulf %84, %83 : vector<16x128xf32>
    %cst_46 = arith.constant 0.707106769 : f32
    %86 = vector.broadcast %cst_46 : f32 to vector<16x128xf32>
    %87 = arith.mulf %83, %86 : vector<16x128xf32>
    %88 = math.erf %87 : vector<16x128xf32>
    %cst_47 = arith.constant 1.000000e+00 : f32
    %89 = vector.broadcast %cst_47 : f32 to vector<16x128xf32>
    %90 = arith.addf %89, %88 : vector<16x128xf32>
    %91 = arith.mulf %85, %90 : vector<16x128xf32>
    %c0_48 = arith.constant 0 : index
    %c0_49 = arith.constant 0 : index
    %92 = vector.load %arg7[%c0_48, %c0_49] : memref<128x256xf32, #tpu.memory_space<vmem>>, vector<128x256xf32>
    %cst_50 = arith.constant dense<0.000000e+00> : vector<16x256xf32>
    %93 = tpu.matmul %91, %92, %cst_50 {dimension_numbers = #tpu.dot_dimension_numbers<[1], [0], [0], [1], [0, 0, 1, 1], [], []>} : vector<16x128xf32>, vector<128x256xf32>, vector<16x256xf32> -> vector<16x256xf32>
    %c0_51 = arith.constant 0 : index
    %c0_52 = arith.constant 0 : index
    %94 = vector.load %arg8[%c0_51, %c0_52] : memref<1x256xf32, #tpu.memory_space<vmem>>, vector<1x256xf32>
    %95 = vector.broadcast %94 : vector<1x256xf32> to vector<16x256xf32>
    %96 = arith.addf %93, %95 : vector<16x256xf32>
    %97 = vector.extract_strided_slice %96 {offsets = [0, 0], sizes = [16, 128], strides = [1, 1]} : vector<16x256xf32> to vector<16x128xf32>
    %98 = vector.extract_strided_slice %96 {offsets = [0, 128], sizes = [16, 128], strides = [1, 1]} : vector<16x256xf32> to vector<16x128xf32>
    %99 = arith.negf %98 : vector<16x128xf32>
    %100 = math.exp %99 : vector<16x128xf32>
    %cst_53 = arith.constant 1.000000e+00 : f32
    %101 = vector.broadcast %cst_53 : f32 to vector<16x128xf32>
    %102 = arith.addf %101, %100 : vector<16x128xf32>
    %103 = arith.divf %101, %102 : vector<16x128xf32>
    %104 = arith.mulf %97, %103 : vector<16x128xf32>
    %105 = arith.addf %3, %104 : vector<16x128xf32>
    %c0_54 = arith.constant 0 : index
    %c0_55 = arith.constant 0 : index
    %106 = vector.load %arg9[%c0_54, %c0_55] : memref<16x128xf32, #tpu.memory_space<vmem>>, vector<16x128xf32>
    tpu.vector_store %arg9[%c0_54, %c0_55], %105 {strides = array<i32>} : memref<16x128xf32, #tpu.memory_space<vmem>>, vector<16x128xf32>,
    return
  }
  func.func @transform_0(%arg0: i32) -> (i32, i32) {
    %c0_i32 = arith.constant 0 : i32
    %c0_i32_0 = arith.constant 0 : i32
    return %arg0, %c0_i32 : i32, i32
  }
  func.func @transform_1(%arg0: i32) -> (i32, i32) {
    %c0_i32 = arith.constant 0 : i32
    %c0_i32_0 = arith.constant 0 : i32
    %c0_i32_1 = arith.constant 0 : i32
    return %c0_i32, %c0_i32_0 : i32, i32
  }
  func.func @transform_2(%arg0: i32) -> (i32, i32) {
    %c0_i32 = arith.constant 0 : i32
    %c0_i32_0 = arith.constant 0 : i32
    %c0_i32_1 = arith.constant 0 : i32
    return %c0_i32, %c0_i32_0 : i32, i32
  }
  func.func @transform_3(%arg0: i32) -> (i32, i32, i32) {
    %c0_i32 = arith.constant 0 : i32
    %c0_i32_0 = arith.constant 0 : i32
    %c0_i32_1 = arith.constant 0 : i32
    %c0_i32_2 = arith.constant 0 : i32
    return %c0_i32, %c0_i32_0, %c0_i32_1 : i32, i32, i32
  }
  func.func @transform_4(%arg0: i32) -> (i32, i32) {
    %c0_i32 = arith.constant 0 : i32
    %c0_i32_0 = arith.constant 0 : i32
    %c0_i32_1 = arith.constant 0 : i32
    return %c0_i32, %c0_i32_0 : i32, i32
  }
  func.func @transform_5(%arg0: i32) -> (i32, i32) {
    %c0_i32 = arith.constant 0 : i32
    %c0_i32_0 = arith.constant 0 : i32
    %c0_i32_1 = arith.constant 0 : i32
    return %c0_i32, %c0_i32_0 : i32, i32
  }
  func.func @transform_6(%arg0: i32) -> (i32, i32) {
    %c0_i32 = arith.constant 0 : i32
    %c0_i32_0 = arith.constant 0 : i32
    %c0_i32_1 = arith.constant 0 : i32
    return %c0_i32, %c0_i32_0 : i32, i32
  }
  func.func @transform_7(%arg0: i32) -> (i32, i32) {
    %c0_i32 = arith.constant 0 : i32
    %c0_i32_0 = arith.constant 0 : i32
    %c0_i32_1 = arith.constant 0 : i32
    return %c0_i32, %c0_i32_0 : i32, i32
  }
  func.func @transform_8(%arg0: i32) -> (i32, i32) {
    %c0_i32 = arith.constant 0 : i32
    %c0_i32_0 = arith.constant 0 : i32
    return %arg0, %c0_i32 : i32, i32
  }
}

</mosaic_0001>

<llo_original>
// kernel: fwd.1
$region0: #{fwd.1}
  #allocation0 [shape = 'u32[]', space=smem, size = 0x4, offset = 0x4, fixed_abs, tag = 'smem constant byte address 0x4 - core index']
  #allocation1 [shape = 'u32[144,128]{1,0:T(1,128)}', space=vmem, size = 0x12000, scoped, tag = 'internal scratch']
  #allocation2 [shape = 'f32[1,64]{1,0:T(1,128)}', space=vmem, size = 0x200, scoped, tag = 'scratch operand']
  %s0 = inlined_call_operand.vmem [shape: f32[16,128], index: 0, kind: input, shape index: {}]
  %s1 = inlined_call_operand.hbm [shape: f32[128,64], index: 1, kind: input, shape index: {}]
  %s2 = inlined_call_operand.vmem [shape: f32[1,64], index: 2, kind: input, shape index: {}]
  %s3 = inlined_call_operand.hbm [shape: f32[9,64,64], index: 3, kind: input, shape index: {}]
  %s4 = inlined_call_operand.hbm [shape: f32[64,128], index: 4, kind: input, shape index: {}]
  %s5 = inlined_call_operand.vmem [shape: f32[1,128], index: 5, kind: input, shape index: {}]
  %s6 = inlined_call_operand.hbm [shape: f32[128,256], index: 6, kind: input, shape index: {}]
  %s7 = inlined_call_operand.vmem [shape: f32[1,256], index: 7, kind: input, shape index: {}]
  %s8 = inlined_call_operand.hbm [shape: f32[16,128], index: 8, kind: output, shape index: {}]
  %s9 = sld [smem:[#allocation0]]
  $region66: #{fwd.1} parent=0
    _
  %s11 = ssub.s32 1, %s9
  %s12 = scalar_select 0, %s11, %s9
  $region1: #{fwd.1} parent=0
    #allocation3 [shape = 'u8[65536]{0}', space=vmem, size = 0x10000, scoped, tag = 'input window, operand 1, single buffered']
    #allocation4 [shape = 's32[1]{0}', space=sflag, size = 0x4, scoped, tag = 'scoped memory for fwd.1']
    #allocation5 [shape = 's32[1]{0}', space=sflag, size = 0x4, scoped, tag = 'scoped memory for fwd.1']
    #allocation6 [shape = 'u8[294912]{0}', space=vmem, size = 0x48000, scoped, tag = 'input window, operand 3, single buffered']
    #allocation7 [shape = 's32[1]{0}', space=sflag, size = 0x4, scoped, tag = 'scoped memory for fwd.1']
    #allocation8 [shape = 'u8[32768]{0}', space=vmem, size = 0x8000, scoped, tag = 'input window, operand 4, single buffered']
    #allocation9 [shape = 'u8[131072]{0}', space=vmem, size = 0x20000, scoped, tag = 'input window, operand 6, single buffered']
    #allocation10 [shape = 's32[1]{0}', space=sflag, size = 0x4, scoped, tag = 'scoped memory for fwd.1']
    #allocation11 [shape = 'u8[8192]{0}', space=vmem, size = 0x2000, scoped, tag = 'output window, operand 0, single buffered']
    %13 = vsyncpa [#allocation4], 0
    %14 = vsyncpa [#allocation7], 0
    %15 = vsyncpa [#allocation10], 0
    %16 = vsyncpa [#allocation5], 0
    // Predicated region
    $region2: #{fwd.1} parent=1 // pred_check
      _
    $region3: #{fwd.1} parent=1 // pred_check_branch
      %18 = sbr.rel (0) target = $region5
    $region4: #{fwd.1} parent=1 // pred_region
      _
    $region5: #{fwd.1} parent=1 // pred_fallthru
      _
    // Predicated region
    $region6: #{fwd.1} parent=1 // pred_check
      _
    $region7: #{fwd.1} parent=1 // pred_check_branch
      %20 = sbr.rel (0) target = $region9
    $region8: #{fwd.1} parent=1 // pred_region
      %s22 = ssub.s32 2048, 2048
      %23 = vsyncadd [#allocation4], %s22
      %s24 = sshll.u32 [#allocation3], 4
      %s25 = int_to_ptr.vmem [resolvable:$true] %s24
      %30 = dma.hbm_to_vmem [thread:$0]  %s1, 2048, %s25, [#allocation4], 128, 128, 8
    $region9: #{fwd.1} parent=1 // pred_fallthru
      _
    // Predicated region
    $region10: #{fwd.1} parent=1 // pred_check
      _
    $region11: #{fwd.1} parent=1 // pred_check_branch
      %32 = sbr.rel (0) target = $region13
    $region12: #{fwd.1} parent=1 // pred_region
      _
    $region13: #{fwd.1} parent=1 // pred_fallthru
      _
    // Predicated region
    $region14: #{fwd.1} parent=1 // pred_check
      _
    $region15: #{fwd.1} parent=1 // pred_check_branch
      %34 = sbr.rel (0) target = $region17
    $region16: #{fwd.1} parent=1 // pred_region
      %s36 = ssub.s32 9216, 9216
      %37 = vsyncadd [#allocation7], %s36
      %s38 = sshll.u32 [#allocation6], 4
      %s39 = int_to_ptr.vmem [resolvable:$true] %s38
      %44 = dma.hbm_to_vmem [thread:$0]  %s3, 9216, %s39, [#allocation7], 128, 128, 8
    $region17: #{fwd.1} parent=1 // pred_fallthru
      _
    // Predicated region
    $region18: #{fwd.1} parent=1 // pred_check
      _
    $region19: #{fwd.1} parent=1 // pred_check_branch
      %46 = sbr.rel (0) target = $region21
    $region20: #{fwd.1} parent=1 // pred_region
      %s48 = ssub.s32 1024, 1024
      %49 = vsyncadd [#allocation7], %s48
      %s50 = sshll.u32 [#allocation8], 4
      %s51 = int_to_ptr.vmem [resolvable:$true] %s50
      %56 = dma.hbm_to_vmem [thread:$0]  %s4, 1024, %s51, [#allocation7], 128, 128, 8
    $region21: #{fwd.1} parent=1 // pred_fallthru
      _
    // Predicated region
    $region22: #{fwd.1} parent=1 // pred_check
      _
    $region23: #{fwd.1} parent=1 // pred_check_branch
      %58 = sbr.rel (0) target = $region25
    $region24: #{fwd.1} parent=1 // pred_region
      _
    $region25: #{fwd.1} parent=1 // pred_fallthru
      _
    // Predicated region
    $region26: #{fwd.1} parent=1 // pred_check
      _
    $region27: #{fwd.1} parent=1 // pred_check_branch
      %60 = sbr.rel (0) target = $region29
    $region28: #{fwd.1} parent=1 // pred_region
      %s62 = ssub.s32 4096, 4096
      %63 = vsyncadd [#allocation10], %s62
      %s64 = sshll.u32 [#allocation9], 4
      %s65 = int_to_ptr.vmem [resolvable:$true] %s64
      %70 = dma.hbm_to_vmem [thread:$0]  %s6, 4096, %s65, [#allocation10], 256, 256, 16
    $region29: #{fwd.1} parent=1 // pred_fallthru
      _
    // Predicated region
    $region30: #{fwd.1} parent=1 // pred_check
      _
    $region31: #{fwd.1} parent=1 // pred_check_branch
      %72 = sbr.rel (0) target = $region33
    $region32: #{fwd.1} parent=1 // pred_region
      _
    $region33: #{fwd.1} parent=1 // pred_fallthru
      _
    // Predicated region
    $region34: #{fwd.1} parent=1 // pred_check
      _
    $region35: #{fwd.1} parent=1 // pred_check_branch
      %74 = sbr.rel (0) target = $region37
    $region36: #{fwd.1} parent=1 // pred_region
      %75 = dma.done [#allocation4], 2048
    $region37: #{fwd.1} parent=1 // pred_fallthru
      _
    // Predicated region
    $region38: #{fwd.1} parent=1 // pred_check
      _
    $region39: #{fwd.1} parent=1 // pred_check_branch
      %77 = sbr.rel (0) target = $region41
    $region40: #{fwd.1} parent=1 // pred_region
      %78 = dma.done [#allocation7], 9216
    $region41: #{fwd.1} parent=1 // pred_fallthru
      _
    // Predicated region
    $region42: #{fwd.1} parent=1 // pred_check
      _
    $region43: #{fwd.1} parent=1 // pred_check_branch
      %80 = sbr.rel (0) target = $region45
    $region44: #{fwd.1} parent=1 // pred_region
      %81 = dma.done [#allocation7], 1024
    $region45: #{fwd.1} parent=1 // pred_fallthru
      _
    // Predicated region
    $region46: #{fwd.1} parent=1 // pred_check
      _
    $region47: #{fwd.1} parent=1 // pred_check_branch
      %83 = sbr.rel (0) target = $region49
    $region48: #{fwd.1} parent=1 // pred_region
      %84 = dma.done [#allocation10], 4096
    $region49: #{fwd.1} parent=1 // pred_fallthru
      _
    %p85 = scmp.eq.s32.totalorder 0, 0
    // Predicated region
    $region50: #{fwd.1} parent=1 // pred_check
      %p86 = pneg %p85
    $region51: #{fwd.1} parent=1 // pred_check_branch
      %88 = sbr.rel (%p86) target = $region53
    $region52: #{fwd.1} parent=1 // pred_region
      %vm89 = vcmask 516096
      %90 = vst.msk [vmem:[#allocation2] sm:$0x1] %vm89, 0.0
    $region53: #{fwd.1} parent=1 // pred_fallthru
      _
    %v91 = vld [vmem:[%s0] sm:$0xff]
    %v92 = vld [vmem:[%s0 + $0x8] sm:$0xff]
    %93 = vadd.xlane.f32.xlu0 %v91
    %v94 = vpop.xlane.xlu0 %93
    %95 = vadd.xlane.f32.xlu0 %v92
    %v96 = vpop.xlane.xlu0 %95
    %v97 = vmul.f32 %v94, 0.03125
    %v98 = vmul.f32 %v96, 0.03125
    %v99 = vsub.f32 %v91, %v97
    %v100 = vsub.f32 %v92, %v98
    %v101 = vmul.f32 %v99, %v99
    %v102 = vmul.f32 %v100, %v100
    %103 = vadd.xlane.f32.xlu0 %v101
    %v104 = vpop.xlane.xlu0 %103
    %105 = vadd.xlane.f32.xlu0 %v102
    %v106 = vpop.xlane.xlu0 %105
    %v107 = vmul.f32 %v97, 96.0
    %v108 = vmul.f32 %v98, 96.0
    %v109 = vmul.f32 %v107, %v97
    %v110 = vmul.f32 %v108, %v98
    %v111 = vsub.f32 %v104, %v109
    %v112 = vsub.f32 %v106, %v110
    %v113 = vmul.f32 %v111, 0.03125
    %v114 = vmul.f32 %v112, 0.03125
    %v115 = vadd.f32 %v113, 1e-05
    %v116 = vadd.f32 %v114, 1e-05
    %v117 = vrsqrt.pop %v115
    %v118 = vrsqrt.pop %v116
    %v119 = vmul.f32 %v99, %v117
    %v120 = vmul.f32 %v100, %v118
    %v121 = vld [vmem:[#allocation3] sm:$0xff]
    %v122 = vld [vmem:[#allocation3 + $0x8] sm:$0xff]
    %v123 = vld [vmem:[#allocation3 + $0x10] sm:$0xff]
    %v124 = vld [vmem:[#allocation3 + $0x18] sm:$0xff]
    %v125 = vld [vmem:[#allocation3 + $0x20] sm:$0xff]
    %v126 = vld [vmem:[#allocation3 + $0x28] sm:$0xff]
    %v127 = vld [vmem:[#allocation3 + $0x30] sm:$0xff]
    %v128 = vld [vmem:[#allocation3 + $0x38] sm:$0xff]
    %v129 = vld [vmem:[#allocation3 + $0x40] sm:$0xff]
    %v130 = vld [vmem:[#allocation3 + $0x48] sm:$0xff]
    %v131 = vld [vmem:[#allocation3 + $0x50] sm:$0xff]
    %v132 = vld [vmem:[#allocation3 + $0x58] sm:$0xff]
    %v133 = vld [vmem:[#allocation3 + $0x60] sm:$0xff]
    %v134 = vld [vmem:[#allocation3 + $0x68] sm:$0xff]
    %v135 = vld [vmem:[#allocation3 + $0x70] sm:$0xff]
    %v136 = vld [vmem:[#allocation3 + $0x78] sm:$0xff]
    %137 = vmatprep.subr.mxu0 0.0
    %138 = vmatpush1.msra.mxu0 %v136
    %139 = vmatprep.subr.mxu0 0.0
    %140 = vmatpush1.msra.mxu0 %v135
    %141 = vmatprep.subr.mxu0 0.0
    %142 = vmatpush1.msra.mxu0 %v134
    %143 = vmatprep.subr.mxu0 0.0
    %144 = vmatpush1.msra.mxu0 %v133
    %145 = vmatprep.subr.mxu0 0.0
    %146 = vmatpush1.msra.mxu0 %v132
    %147 = vmatprep.subr.mxu0 0.0
    %148 = vmatpush1.msra.mxu0 %v131
    %149 = vmatprep.subr.mxu0 0.0
    %150 = vmatpush1.msra.mxu0 %v130
    %151 = vmatprep.subr.mxu0 0.0
    %152 = vmatpush1.msra.mxu0 %v129
    %153 = vmatprep.subr.mxu0 0.0
    %154 = vmatpush1.msra.mxu0 %v128
    %155 = vmatprep.subr.mxu0 0.0
    %156 = vmatpush1.msra.mxu0 %v127
    %157 = vmatprep.subr.mxu0 0.0
    %158 = vmatpush1.msra.mxu0 %v126
    %159 = vmatprep.subr.mxu0 0.0
    %160 = vmatpush1.msra.mxu0 %v125
    %161 = vmatprep.subr.mxu0 0.0
    %162 = vmatpush1.msra.mxu0 %v124
    %163 = vmatprep.subr.mxu0 0.0
    %164 = vmatpush1.msra.mxu0 %v123
    %165 = vmatprep.subr.mxu0 0.0
    %166 = vmatpush1.msra.mxu0 %v122
    %167 = vmatprep.subr.mxu0 0.0
    %168 = vmatpush1.msra.mxu0 %v121
    %169 = vmatprep.subr.mxu0 0.0
    %170 = vmatpush2.msra.mxu0 0.0
    %171 = vmatprep.subr.mxu0 0.0
    %172 = vmatpush2.msra.mxu0 0.0
    %173 = vmatprep.subr.mxu0 0.0
    %174 = vmatpush2.msra.mxu0 0.0
    %175 = vmatprep.subr.mxu0 0.0
    %176 = vmatpush2.msra.mxu0 0.0
    %177 = vmatprep.subr.mxu0 0.0
    %178 = vmatpush2.msra.mxu0 0.0
    %179 = vmatprep.subr.mxu0 0.0
    %180 = vmatpush2.msra.mxu0 0.0
    %181 = vmatprep.subr.mxu0 0.0
    %182 = vmatpush2.msra.mxu0 0.0
    %183 = vmatprep.subr.mxu0 0.0
    %184 = vmatpush2.msra.mxu0 0.0
    %185 = vmatprep.subr.mxu0 0.0
    %186 = vmatpush2.msra.mxu0 0.0
    %187 = vmatprep.subr.mxu0 0.0
    %188 = vmatpush2.msra.mxu0 0.0
    %189 = vmatprep.subr.mxu0 0.0
    %190 = vmatpush2.msra.mxu0 0.0
    %191 = vmatprep.subr.mxu0 0.0
    %192 = vmatpush2.msra.mxu0 0.0
    %193 = vmatprep.subr.mxu0 0.0
    %194 = vmatpush2.msra.mxu0 0.0
    %195 = vmatprep.subr.mxu0 0.0
    %196 = vmatpush2.msra.mxu0 0.0
    %197 = vmatprep.subr.mxu0 0.0
    %198 = vmatpush2.msra.mxu0 0.0
    %199 = vmatprep.subr.mxu0 0.0
    %200 = vmatpush2.msra.mxu0 0.0
    %201 = vmatprep.mubr.f32.mxu0 0.0
    %202 = vmatmul.mubr.f32.gmra.mxu0 %v119
    %v203 = vpop.f32.mrf.mxu0
    %v204 = vadd.f32 0.0, %v203
    %v205 = vpop.f32.mrf.mxu0
    %206 = vmatprep.mubr.f32.mxu0 0.0
    %207 = vmatmul.mubr.f32.gmra.mxu0 %v120
    %v208 = vpop.f32.mrf.mxu0
    %v209 = vadd.f32 0.0, %v208
    %v210 = vpop.f32.mrf.mxu0
    %211 = vdwg.mxu0
    %v212 = vld [vmem:[%s2] sm:$0x1]
    %v214 = vlaneseq
    %v215 = vshrl.u32 %v214, 7
    %v216 = vsub.s32 0, %v215
    %v217 = vrot.slane %v212, %v216
    %v219 = vmul.f32 %v217, %v204
    %v220 = vmul.f32 %v217, %v209
    %v221 = vlaneseq
    %v222 = vshrl.u32 %v221, 7
    %v223 = vadd.s32 %v222, 8
    %vm224 = vcmp.eq.s32.totalorder %v222, 0
    %vm225 = vcmp.eq.s32.totalorder %v223, 0
    %v226 = vld [vmem:[#allocation2] sm:$0x1]
    %v228 = vlaneseq
    %v229 = vshrl.u32 %v228, 7
    %v230 = vsub.s32 0, %v229
    %v231 = vrot.slane %v226, %v230
    %v233 = vsel %vm224, %v231, 0.0
    %v234 = vsel %vm225, %v231, 0.0
    %v235 = vadd.f32 %v219, %v233
    %v236 = vadd.f32 %v220, %v234
    %vm237 = vcmp.ge.s32.totalorder %v222, 1
    %vm238 = vcmp.ge.s32.totalorder %v223, 1
    %v239 = vrot.slane %v235, 7
    %v240 = vrot.slane %v236, 7
    %vm241 = vcmp.lt.s32.totalorder %v222, 1
    %v242 = vsel %vm241, %v239, %v240
    %v243 = vsel %vm241, %v240, %v239
    %v244 = vsel %vm237, %v243, 0.0
    %v245 = vsel %vm238, %v242, 0.0
    %v246 = vld [vmem:[#allocation6] sm:$0xff]
    %v247 = vld [vmem:[#allocation6 + $0x8] sm:$0xff]
    %v248 = vld [vmem:[#allocation6 + $0x10] sm:$0xff]
    %v249 = vld [vmem:[#allocation6 + $0x18] sm:$0xff]
    %v250 = vld [vmem:[#allocation6 + $0x20] sm:$0xff]
    %v251 = vld [vmem:[#allocation6 + $0x28] sm:$0xff]
    %v252 = vld [vmem:[#allocation6 + $0x30] sm:$0xff]
    %v253 = vld [vmem:[#allocation6 + $0x38] sm:$0xff]
    %vm254 = vcmask 523264
    %v256 = vsel %vm254, %v244, 0
    %v259 = vsel %vm254, %v245, 0
    %261 = vmatprep.subr.mxu0 0.0
    %262 = vmatpush1.msra.mxu0 0.0
    %263 = vmatprep.subr.mxu0 0.0
    %264 = vmatpush1.msra.mxu0 0.0
    %265 = vmatprep.subr.mxu0 0.0
    %266 = vmatpush1.msra.mxu0 0.0
    %267 = vmatprep.subr.mxu0 0.0
    %268 = vmatpush1.msra.mxu0 0.0
    %269 = vmatprep.subr.mxu0 0.0
    %270 = vmatpush1.msra.mxu0 0.0
    %271 = vmatprep.subr.mxu0 0.0
    %272 = vmatpush1.msra.mxu0 0.0
    %273 = vmatprep.subr.mxu0 0.0
    %274 = vmatpush1.msra.mxu0 0.0
    %275 = vmatprep.subr.mxu0 0.0
    %276 = vmatpush1.msra.mxu0 0.0
    %277 = vmatprep.subr.mxu0 0.0
    %278 = vmatpush1.msra.mxu0 %v253
    %279 = vmatprep.subr.mxu0 0.0
    %280 = vmatpush1.msra.mxu0 %v252
    %281 = vmatprep.subr.mxu0 0.0
    %282 = vmatpush1.msra.mxu0 %v251
    %283 = vmatprep.subr.mxu0 0.0
    %284 = vmatpush1.msra.mxu0 %v250
    %285 = vmatprep.subr.mxu0 0.0
    %286 = vmatpush1.msra.mxu0 %v249
    %287 = vmatprep.subr.mxu0 0.0
    %288 = vmatpush1.msra.mxu0 %v248
    %289 = vmatprep.subr.mxu0 0.0
    %290 = vmatpush1.msra.mxu0 %v247
    %291 = vmatprep.subr.mxu0 0.0
    %292 = vmatpush1.msra.mxu0 %v246
    %293 = vmatprep.subr.mxu0 0.0
    %294 = vmatpush2.msra.mxu0 0.0
    %295 = vmatprep.subr.mxu0 0.0
    %296 = vmatpush2.msra.mxu0 0.0
    %297 = vmatprep.subr.mxu0 0.0
    %298 = vmatpush2.msra.mxu0 0.0
    %299 = vmatprep.subr.mxu0 0.0
    %300 = vmatpush2.msra.mxu0 0.0
    %301 = vmatprep.subr.mxu0 0.0
    %302 = vmatpush2.msra.mxu0 0.0
    %303 = vmatprep.subr.mxu0 0.0
    %304 = vmatpush2.msra.mxu0 0.0
    %305 = vmatprep.subr.mxu0 0.0
    %306 = vmatpush2.msra.mxu0 0.0
    %307 = vmatprep.subr.mxu0 0.0
    %308 = vmatpush2.msra.mxu0 0.0
    %309 = vmatprep.subr.mxu0 0.0
    %310 = vmatpush2.msra.mxu0 0.0
    %311 = vmatprep.subr.mxu0 0.0
    %312 = vmatpush2.msra.mxu0 0.0
    %313 = vmatprep.subr.mxu0 0.0
    %314 = vmatpush2.msra.mxu0 0.0
    %315 = vmatprep.subr.mxu0 0.0
    %316 = vmatpush2.msra.mxu0 0.0
    %317 = vmatprep.subr.mxu0 0.0
    %318 = vmatpush2.msra.mxu0 0.0
    %319 = vmatprep.subr.mxu0 0.0
    %320 = vmatpush2.msra.mxu0 0.0
    %321 = vmatprep.subr.mxu0 0.0
    %322 = vmatpush2.msra.mxu0 0.0
    %323 = vmatprep.subr.mxu0 0.0
    %324 = vmatpush2.msra.mxu0 0.0
    %325 = vmatprep.mubr.f32.mxu0 0.0
    %326 = vmatmul.mubr.f32.gmra.mxu0 %v256
    %v327 = vpop.f32.mrf.mxu0
    %v328 = vadd.f32 0.0, %v327
    %v329 = vpop.f32.mrf.mxu0
    %330 = vmatprep.mubr.f32.mxu0 0.0
    %331 = vmatmul.mubr.f32.gmra.mxu0 %v259
    %v332 = vpop.f32.mrf.mxu0
    %v333 = vadd.f32 0.0, %v332
    %v334 = vpop.f32.mrf.mxu0
    %335 = vdwg.mxu0
    %v336 = vadd.f32 %v235, %v328
    %v337 = vadd.f32 %v236, %v333
    %vm338 = vcmp.ge.s32.totalorder %v222, 2
    %vm339 = vcmp.ge.s32.totalorder %v223, 2
    %v340 = vrot.slane %v336, 6
    %v341 = vrot.slane %v337, 6
    %vm342 = vcmp.lt.s32.totalorder %v222, 2
    %v343 = vsel %vm342, %v340, %v341
    %v344 = vsel %vm342, %v341, %v340
    %v345 = vsel %vm338, %v344, 0.0
    %v346 = vsel %vm339, %v343, 0.0
    %s347 = scalar_lea.vmem [#allocation6], 64
    %v348 = vld [vmem:[%s347] sm:$0xff]
    %v349 = vld [vmem:[%s347 + $0x8] sm:$0xff]
    %v350 = vld [vmem:[%s347 + $0x10] sm:$0xff]
    %v351 = vld [vmem:[%s347 + $0x18] sm:$0xff]
    %v352 = vld [vmem:[%s347 + $0x20] sm:$0xff]
    %v353 = vld [vmem:[%s347 + $0x28] sm:$0xff]
    %v354 = vld [vmem:[%s347 + $0x30] sm:$0xff]
    %v355 = vld [vmem:[%s347 + $0x38] sm:$0xff]
    %v357 = vsel %vm254, %v345, 0
    %v360 = vsel %vm254, %v346, 0
    %362 = vmatprep.subr.mxu0 0.0
    %363 = vmatpush1.msra.mxu0 0.0
    %364 = vmatprep.subr.mxu0 0.0
    %365 = vmatpush1.msra.mxu0 0.0
    %366 = vmatprep.subr.mxu0 0.0
    %367 = vmatpush1.msra.mxu0 0.0
    %368 = vmatprep.subr.mxu0 0.0
    %369 = vmatpush1.msra.mxu0 0.0
    %370 = vmatprep.subr.mxu0 0.0
    %371 = vmatpush1.msra.mxu0 0.0
    %372 = vmatprep.subr.mxu0 0.0
    %373 = vmatpush1.msra.mxu0 0.0
    %374 = vmatprep.subr.mxu0 0.0
    %375 = vmatpush1.msra.mxu0 0.0
    %376 = vmatprep.subr.mxu0 0.0
    %377 = vmatpush1.msra.mxu0 0.0
    %378 = vmatprep.subr.mxu0 0.0
    %379 = vmatpush1.msra.mxu0 %v355
    %380 = vmatprep.subr.mxu0 0.0
    %381 = vmatpush1.msra.mxu0 %v354
    %382 = vmatprep.subr.mxu0 0.0
    %383 = vmatpush1.msra.mxu0 %v353
    %384 = vmatprep.subr.mxu0 0.0
    %385 = vmatpush1.msra.mxu0 %v352
    %386 = vmatprep.subr.mxu0 0.0
    %387 = vmatpush1.msra.mxu0 %v351
    %388 = vmatprep.subr.mxu0 0.0
    %389 = vmatpush1.msra.mxu0 %v350
    %390 = vmatprep.subr.mxu0 0.0
    %391 = vmatpush1.msra.mxu0 %v349
    %392 = vmatprep.subr.mxu0 0.0
    %393 = vmatpush1.msra.mxu0 %v348
    %394 = vmatprep.subr.mxu0 0.0
    %395 = vmatpush2.msra.mxu0 0.0
    %396 = vmatprep.subr.mxu0 0.0
    %397 = vmatpush2.msra.mxu0 0.0
    %398 = vmatprep.subr.mxu0 0.0
    %399 = vmatpush2.msra.mxu0 0.0
    %400 = vmatprep.subr.mxu0 0.0
    %401 = vmatpush2.msra.mxu0 0.0
    %402 = vmatprep.subr.mxu0 0.0
    %403 = vmatpush2.msra.mxu0 0.0
    %404 = vmatprep.subr.mxu0 0.0
    %405 = vmatpush2.msra.mxu0 0.0
    %406 = vmatprep.subr.mxu0 0.0
    %407 = vmatpush2.msra.mxu0 0.0
    %408 = vmatprep.subr.mxu0 0.0
    %409 = vmatpush2.msra.mxu0 0.0
    %410 = vmatprep.subr.mxu0 0.0
    %411 = vmatpush2.msra.mxu0 0.0
    %412 = vmatprep.subr.mxu0 0.0
    %413 = vmatpush2.msra.mxu0 0.0
    %414 = vmatprep.subr.mxu0 0.0
    %415 = vmatpush2.msra.mxu0 0.0
    %416 = vmatprep.subr.mxu0 0.0
    %417 = vmatpush2.msra.mxu0 0.0
    %418 = vmatprep.subr.mxu0 0.0
    %419 = vmatpush2.msra.mxu0 0.0
    %420 = vmatprep.subr.mxu0 0.0
    %421 = vmatpush2.msra.mxu0 0.0
    %422 = vmatprep.subr.mxu0 0.0
    %423 = vmatpush2.msra.mxu0 0.0
    %424 = vmatprep.subr.mxu0 0.0
    %425 = vmatpush2.msra.mxu0 0.0
    %426 = vmatprep.mubr.f32.mxu0 0.0
    %427 = vmatmul.mubr.f32.gmra.mxu0 %v357
    %v428 = vpop.f32.mrf.mxu0
    %v429 = vadd.f32 0.0, %v428
    %v430 = vpop.f32.mrf.mxu0
    %431 = vmatprep.mubr.f32.mxu0 0.0
    %432 = vmatmul.mubr.f32.gmra.mxu0 %v360
    %v433 = vpop.f32.mrf.mxu0
    %v434 = vadd.f32 0.0, %v433
    %v435 = vpop.f32.mrf.mxu0
    %436 = vdwg.mxu0
    %v437 = vadd.f32 %v336, %v429
    %v438 = vadd.f32 %v337, %v434
    %vm439 = vcmp.ge.s32.totalorder %v222, 4
    %vm440 = vcmp.ge.s32.totalorder %v223, 4
    %v441 = vrot.slane %v437, 4
    %v442 = vrot.slane %v438, 4
    %vm443 = vcmp.lt.s32.totalorder %v222, 4
    %v444 = vsel %vm443, %v441, %v442
    %v445 = vsel %vm443, %v442, %v441
    %v446 = vsel %vm439, %v445, 0.0
    %v447 = vsel %vm440, %v444, 0.0
    %s448 = scalar_lea.vmem [#allocation6], 128
    %v449 = vld [vmem:[%s448] sm:$0xff]
    %v450 = vld [vmem:[%s448 + $0x8] sm:$0xff]
    %v451 = vld [vmem:[%s448 + $0x10] sm:$0xff]
    %v452 = vld [vmem:[%s448 + $0x18] sm:$0xff]
    %v453 = vld [vmem:[%s448 + $0x20] sm:$0xff]
    %v454 = vld [vmem:[%s448 + $0x28] sm:$0xff]
    %v455 = vld [vmem:[%s448 + $0x30] sm:$0xff]
    %v456 = vld [vmem:[%s448 + $0x38] sm:$0xff]
    %v458 = vsel %vm254, %v446, 0
    %v461 = vsel %vm254, %v447, 0
    %463 = vmatprep.subr.mxu0 0.0
    %464 = vmatpush1.msra.mxu0 0.0
    %465 = vmatprep.subr.mxu0 0.0
    %466 = vmatpush1.msra.mxu0 0.0
    %467 = vmatprep.subr.mxu0 0.0
    %468 = vmatpush1.msra.mxu0 0.0
    %469 = vmatprep.subr.mxu0 0.0
    %470 = vmatpush1.msra.mxu0 0.0
    %471 = vmatprep.subr.mxu0 0.0
    %472 = vmatpush1.msra.mxu0 0.0
    %473 = vmatprep.subr.mxu0 0.0
    %474 = vmatpush1.msra.mxu0 0.0
    %475 = vmatprep.subr.mxu0 0.0
    %476 = vmatpush1.msra.mxu0 0.0
    %477 = vmatprep.subr.mxu0 0.0
    %478 = vmatpush1.msra.mxu0 0.0
    %479 = vmatprep.subr.mxu0 0.0
    %480 = vmatpush1.msra.mxu0 %v456
    %481 = vmatprep.subr.mxu0 0.0
    %482 = vmatpush1.msra.mxu0 %v455
    %483 = vmatprep.subr.mxu0 0.0
    %484 = vmatpush1.msra.mxu0 %v454
    %485 = vmatprep.subr.mxu0 0.0
    %486 = vmatpush1.msra.mxu0 %v453
    %487 = vmatprep.subr.mxu0 0.0
    %488 = vmatpush1.msra.mxu0 %v452
    %489 = vmatprep.subr.mxu0 0.0
    %490 = vmatpush1.msra.mxu0 %v451
    %491 = vmatprep.subr.mxu0 0.0
    %492 = vmatpush1.msra.mxu0 %v450
    %493 = vmatprep.subr.mxu0 0.0
    %494 = vmatpush1.msra.mxu0 %v449
    %495 = vmatprep.subr.mxu0 0.0
    %496 = vmatpush2.msra.mxu0 0.0
    %497 = vmatprep.subr.mxu0 0.0
    %498 = vmatpush2.msra.mxu0 0.0
    %499 = vmatprep.subr.mxu0 0.0
    %500 = vmatpush2.msra.mxu0 0.0
    %501 = vmatprep.subr.mxu0 0.0
    %502 = vmatpush2.msra.mxu0 0.0
    %503 = vmatprep.subr.mxu0 0.0
    %504 = vmatpush2.msra.mxu0 0.0
    %505 = vmatprep.subr.mxu0 0.0
    %506 = vmatpush2.msra.mxu0 0.0
    %507 = vmatprep.subr.mxu0 0.0
    %508 = vmatpush2.msra.mxu0 0.0
    %509 = vmatprep.subr.mxu0 0.0
    %510 = vmatpush2.msra.mxu0 0.0
    %511 = vmatprep.subr.mxu0 0.0
    %512 = vmatpush2.msra.mxu0 0.0
    %513 = vmatprep.subr.mxu0 0.0
    %514 = vmatpush2.msra.mxu0 0.0
    %515 = vmatprep.subr.mxu0 0.0
    %516 = vmatpush2.msra.mxu0 0.0
    %517 = vmatprep.subr.mxu0 0.0
    %518 = vmatpush2.msra.mxu0 0.0
    %519 = vmatprep.subr.mxu0 0.0
    %520 = vmatpush2.msra.mxu0 0.0
    %521 = vmatprep.subr.mxu0 0.0
    %522 = vmatpush2.msra.mxu0 0.0
    %523 = vmatprep.subr.mxu0 0.0
    %524 = vmatpush2.msra.mxu0 0.0
    %525 = vmatprep.subr.mxu0 0.0
    %526 = vmatpush2.msra.mxu0 0.0
    %527 = vmatprep.mubr.f32.mxu0 0.0
    %528 = vmatmul.mubr.f32.gmra.mxu0 %v458
    %v529 = vpop.f32.mrf.mxu0
    %v530 = vadd.f32 0.0, %v529
    %v531 = vpop.f32.mrf.mxu0
    %532 = vmatprep.mubr.f32.mxu0 0.0
    %533 = vmatmul.mubr.f32.gmra.mxu0 %v461
    %v534 = vpop.f32.mrf.mxu0
    %v535 = vadd.f32 0.0, %v534
    %v536 = vpop.f32.mrf.mxu0
    %537 = vdwg.mxu0
    %v538 = vadd.f32 %v437, %v530
    %v539 = vadd.f32 %v438, %v535
    %vm540 = vcmp.ge.s32.totalorder %v222, 8
    %vm541 = vcmp.ge.s32.totalorder %v223, 8
    %v542 = vsel %vm540, %v539, 0.0
    %v543 = vsel %vm541, %v538, 0.0
    %s544 = scalar_lea.vmem [#allocation6], 192
    %v545 = vld [vmem:[%s544] sm:$0xff]
    %v546 = vld [vmem:[%s544 + $0x8] sm:$0xff]
    %v547 = vld [vmem:[%s544 + $0x10] sm:$0xff]
    %v548 = vld [vmem:[%s544 + $0x18] sm:$0xff]
    %v549 = vld [vmem:[%s544 + $0x20] sm:$0xff]
    %v550 = vld [vmem:[%s544 + $0x28] sm:$0xff]
    %v551 = vld [vmem:[%s544 + $0x30] sm:$0xff]
    %v552 = vld [vmem:[%s544 + $0x38] sm:$0xff]
    %v554 = vsel %vm254, %v542, 0
    %v557 = vsel %vm254, %v543, 0
    %559 = vmatprep.subr.mxu0 0.0
    %560 = vmatpush1.msra.mxu0 0.0
    %561 = vmatprep.subr.mxu0 0.0
    %562 = vmatpush1.msra.mxu0 0.0
    %563 = vmatprep.subr.mxu0 0.0
    %564 = vmatpush1.msra.mxu0 0.0
    %565 = vmatprep.subr.mxu0 0.0
    %566 = vmatpush1.msra.mxu0 0.0
    %567 = vmatprep.subr.mxu0 0.0
    %568 = vmatpush1.msra.mxu0 0.0
    %569 = vmatprep.subr.mxu0 0.0
    %570 = vmatpush1.msra.mxu0 0.0
    %571 = vmatprep.subr.mxu0 0.0
    %572 = vmatpush1.msra.mxu0 0.0
    %573 = vmatprep.subr.mxu0 0.0
    %574 = vmatpush1.msra.mxu0 0.0
    %575 = vmatprep.subr.mxu0 0.0
    %576 = vmatpush1.msra.mxu0 %v552
    %577 = vmatprep.subr.mxu0 0.0
    %578 = vmatpush1.msra.mxu0 %v551
    %579 = vmatprep.subr.mxu0 0.0
    %580 = vmatpush1.msra.mxu0 %v550
    %581 = vmatprep.subr.mxu0 0.0
    %582 = vmatpush1.msra.mxu0 %v549
    %583 = vmatprep.subr.mxu0 0.0
    %584 = vmatpush1.msra.mxu0 %v548
    %585 = vmatprep.subr.mxu0 0.0
    %586 = vmatpush1.msra.mxu0 %v547
    %587 = vmatprep.subr.mxu0 0.0
    %588 = vmatpush1.msra.mxu0 %v546
    %589 = vmatprep.subr.mxu0 0.0
    %590 = vmatpush1.msra.mxu0 %v545
    %591 = vmatprep.subr.mxu0 0.0
    %592 = vmatpush2.msra.mxu0 0.0
    %593 = vmatprep.subr.mxu0 0.0
    %594 = vmatpush2.msra.mxu0 0.0
    %595 = vmatprep.subr.mxu0 0.0
    %596 = vmatpush2.msra.mxu0 0.0
    %597 = vmatprep.subr.mxu0 0.0
    %598 = vmatpush2.msra.mxu0 0.0
    %599 = vmatprep.subr.mxu0 0.0
    %600 = vmatpush2.msra.mxu0 0.0
    %601 = vmatprep.subr.mxu0 0.0
    %602 = vmatpush2.msra.mxu0 0.0
    %603 = vmatprep.subr.mxu0 0.0
    %604 = vmatpush2.msra.mxu0 0.0
    %605 = vmatprep.subr.mxu0 0.0
    %606 = vmatpush2.msra.mxu0 0.0
    %607 = vmatprep.subr.mxu0 0.0
    %608 = vmatpush2.msra.mxu0 0.0
    %609 = vmatprep.subr.mxu0 0.0
    %610 = vmatpush2.msra.mxu0 0.0
    %611 = vmatprep.subr.mxu0 0.0
    %612 = vmatpush2.msra.mxu0 0.0
    %613 = vmatprep.subr.mxu0 0.0
    %614 = vmatpush2.msra.mxu0 0.0
    %615 = vmatprep.subr.mxu0 0.0
    %616 = vmatpush2.msra.mxu0 0.0
    %617 = vmatprep.subr.mxu0 0.0
    %618 = vmatpush2.msra.mxu0 0.0
    %619 = vmatprep.subr.mxu0 0.0
    %620 = vmatpush2.msra.mxu0 0.0
    %621 = vmatprep.subr.mxu0 0.0
    %622 = vmatpush2.msra.mxu0 0.0
    %623 = vmatprep.mubr.f32.mxu0 0.0
    %624 = vmatmul.mubr.f32.gmra.mxu0 %v554
    %v625 = vpop.f32.mrf.mxu0
    %v626 = vadd.f32 0.0, %v625
    %v627 = vpop.f32.mrf.mxu0
    %628 = vmatprep.mubr.f32.mxu0 0.0
    %629 = vmatmul.mubr.f32.gmra.mxu0 %v557
    %v630 = vpop.f32.mrf.mxu0
    %v631 = vadd.f32 0.0, %v630
    %v632 = vpop.f32.mrf.mxu0
    %633 = vdwg.mxu0
    %v634 = vadd.f32 %v538, %v626
    %v635 = vadd.f32 %v539, %v631
    %s636 = sadd.s32 0, 1
    %p637 = scmp.lt.s32.totalorder %s636, 1
    // Predicated region
    $region54: #{fwd.1} parent=1 // pred_check
      %p638 = pneg %p637
    $region55: #{fwd.1} parent=1 // pred_check_branch
      %640 = sbr.rel (%p638) target = $region57
    $region56: #{fwd.1} parent=1 // pred_region
      %vm641 = vcmp.eq.s32.totalorder %v222, 15
      %vm642 = vcmp.eq.s32.totalorder %v223, 15
      %v643 = vsel %vm641, %v634, 0.0
      %v644 = vsel %vm642, %v635, 0.0
      %v645 = vld [vmem:[#allocation6] sm:$0xff]
      %v646 = vld [vmem:[#allocation6 + $0x8] sm:$0xff]
      %v647 = vld [vmem:[#allocation6 + $0x10] sm:$0xff]
      %v648 = vld [vmem:[#allocation6 + $0x18] sm:$0xff]
      %v649 = vld [vmem:[#allocation6 + $0x20] sm:$0xff]
      %v650 = vld [vmem:[#allocation6 + $0x28] sm:$0xff]
      %v651 = vld [vmem:[#allocation6 + $0x30] sm:$0xff]
      %v652 = vld [vmem:[#allocation6 + $0x38] sm:$0xff]
      %v654 = vsel %vm254, %v643, 0
      %v657 = vsel %vm254, %v644, 0
      %659 = vmatprep.subr.mxu0 0.0
      %660 = vmatpush1.msra.mxu0 0.0
      %661 = vmatprep.subr.mxu0 0.0
      %662 = vmatpush1.msra.mxu0 0.0
      %663 = vmatprep.subr.mxu0 0.0
      %664 = vmatpush1.msra.mxu0 0.0
      %665 = vmatprep.subr.mxu0 0.0
      %666 = vmatpush1.msra.mxu0 0.0
      %667 = vmatprep.subr.mxu0 0.0
      %668 = vmatpush1.msra.mxu0 0.0
      %669 = vmatprep.subr.mxu0 0.0
      %670 = vmatpush1.msra.mxu0 0.0
      %671 = vmatprep.subr.mxu0 0.0
      %672 = vmatpush1.msra.mxu0 0.0
      %673 = vmatprep.subr.mxu0 0.0
      %674 = vmatpush1.msra.mxu0 0.0
      %675 = vmatprep.subr.mxu0 0.0
      %676 = vmatpush1.msra.mxu0 %v652
      %677 = vmatprep.subr.mxu0 0.0
      %678 = vmatpush1.msra.mxu0 %v651
      %679 = vmatprep.subr.mxu0 0.0
      %680 = vmatpush1.msra.mxu0 %v650
      %681 = vmatprep.subr.mxu0 0.0
      %682 = vmatpush1.msra.mxu0 %v649
      %683 = vmatprep.subr.mxu0 0.0
      %684 = vmatpush1.msra.mxu0 %v648
      %685 = vmatprep.subr.mxu0 0.0
      %686 = vmatpush1.msra.mxu0 %v647
      %687 = vmatprep.subr.mxu0 0.0
      %688 = vmatpush1.msra.mxu0 %v646
      %689 = vmatprep.subr.mxu0 0.0
      %690 = vmatpush1.msra.mxu0 %v645
      %691 = vmatprep.subr.mxu0 0.0
      %692 = vmatpush2.msra.mxu0 0.0
      %693 = vmatprep.subr.mxu0 0.0
      %694 = vmatpush2.msra.mxu0 0.0
      %695 = vmatprep.subr.mxu0 0.0
      %696 = vmatpush2.msra.mxu0 0.0
      %697 = vmatprep.subr.mxu0 0.0
      %698 = vmatpush2.msra.mxu0 0.0
      %699 = vmatprep.subr.mxu0 0.0
      %700 = vmatpush2.msra.mxu0 0.0
      %701 = vmatprep.subr.mxu0 0.0
      %702 = vmatpush2.msra.mxu0 0.0
      %703 = vmatprep.subr.mxu0 0.0
      %704 = vmatpush2.msra.mxu0 0.0
      %705 = vmatprep.subr.mxu0 0.0
      %706 = vmatpush2.msra.mxu0 0.0
      %707 = vmatprep.subr.mxu0 0.0
      %708 = vmatpush2.msra.mxu0 0.0
      %709 = vmatprep.subr.mxu0 0.0
      %710 = vmatpush2.msra.mxu0 0.0
      %711 = vmatprep.subr.mxu0 0.0
      %712 = vmatpush2.msra.mxu0 0.0
      %713 = vmatprep.subr.mxu0 0.0
      %714 = vmatpush2.msra.mxu0 0.0
      %715 = vmatprep.subr.mxu0 0.0
      %716 = vmatpush2.msra.mxu0 0.0
      %717 = vmatprep.subr.mxu0 0.0
      %718 = vmatpush2.msra.mxu0 0.0
      %719 = vmatprep.subr.mxu0 0.0
      %720 = vmatpush2.msra.mxu0 0.0
      %721 = vmatprep.subr.mxu0 0.0
      %722 = vmatpush2.msra.mxu0 0.0
      %723 = vmatprep.mubr.f32.mxu0 0.0
      %724 = vmatmul.mubr.f32.gmra.mxu0 %v654
      %v725 = vpop.f32.mrf.mxu0
      %v726 = vadd.f32 0.0, %v725
      %v727 = vpop.f32.mrf.mxu0
      %728 = vmatprep.mubr.f32.mxu0 0.0
      %729 = vmatmul.mubr.f32.gmra.mxu0 %v657
      %v730 = vpop.f32.mrf.mxu0
      %v731 = vadd.f32 0.0, %v730
      %v732 = vpop.f32.mrf.mxu0
      %733 = vdwg.mxu0
      %v734 = vsel %vm254, %v726, 0.0
      %v735 = vsel %vm254, %v731, 0.0
      %v736 = vadd.f32 %v734, %v735
      %v737 = vrot.slane %v736, 4
      %v738 = vadd.f32 %v736, %v737
      %v739 = vrot.slane %v738, 2
      %v740 = vadd.f32 %v738, %v739
      %v741 = vrot.slane %v740, 1
      %v742 = vadd.f32 %v740, %v741
      %vm743 = vcmask 516096
      %744 = vst.msk [vmem:[#allocation2] sm:$0x1] %vm743, %v742
    $region57: #{fwd.1} parent=1 // pred_fallthru
      _
    %v745 = vld [vmem:[#allocation8] sm:$0xff]
    %v746 = vld [vmem:[#allocation8 + $0x8] sm:$0xff]
    %v747 = vld [vmem:[#allocation8 + $0x10] sm:$0xff]
    %v748 = vld [vmem:[#allocation8 + $0x18] sm:$0xff]
    %v749 = vld [vmem:[#allocation8 + $0x20] sm:$0xff]
    %v750 = vld [vmem:[#allocation8 + $0x28] sm:$0xff]
    %v751 = vld [vmem:[#allocation8 + $0x30] sm:$0xff]
    %v752 = vld [vmem:[#allocation8 + $0x38] sm:$0xff]
    %v753 = vld [vmem:[%s5] sm:$0x1]
    %v755 = vlaneseq
    %v756 = vshrl.u32 %v755, 7
    %v757 = vsub.s32 0, %v756
    %v758 = vrot.slane %v753, %v757
    %v760 = vmul.f32 %v119, %v758
    %v761 = vmul.f32 %v120, %v758
    %v763 = vsel %vm254, %v634, 0
    %v766 = vsel %vm254, %v635, 0
    %768 = vmatprep.subr.mxu0 0.0
    %769 = vmatpush1.msra.mxu0 0.0
    %770 = vmatprep.subr.mxu0 0.0
    %771 = vmatpush1.msra.mxu0 0.0
    %772 = vmatprep.subr.mxu0 0.0
    %773 = vmatpush1.msra.mxu0 0.0
    %774 = vmatprep.subr.mxu0 0.0
    %775 = vmatpush1.msra.mxu0 0.0
    %776 = vmatprep.subr.mxu0 0.0
    %777 = vmatpush1.msra.mxu0 0.0
    %778 = vmatprep.subr.mxu0 0.0
    %779 = vmatpush1.msra.mxu0 0.0
    %780 = vmatprep.subr.mxu0 0.0
    %781 = vmatpush1.msra.mxu0 0.0
    %782 = vmatprep.subr.mxu0 0.0
    %783 = vmatpush1.msra.mxu0 0.0
    %784 = vmatprep.subr.mxu0 0.0
    %785 = vmatpush1.msra.mxu0 %v752
    %786 = vmatprep.subr.mxu0 0.0
    %787 = vmatpush1.msra.mxu0 %v751
    %788 = vmatprep.subr.mxu0 0.0
    %789 = vmatpush1.msra.mxu0 %v750
    %790 = vmatprep.subr.mxu0 0.0
    %791 = vmatpush1.msra.mxu0 %v749
    %792 = vmatprep.subr.mxu0 0.0
    %793 = vmatpush1.msra.mxu0 %v748
    %794 = vmatprep.subr.mxu0 0.0
    %795 = vmatpush1.msra.mxu0 %v747
    %796 = vmatprep.subr.mxu0 0.0
    %797 = vmatpush1.msra.mxu0 %v746
    %798 = vmatprep.subr.mxu0 0.0
    %799 = vmatpush1.msra.mxu0 %v745
    %800 = vmatprep.subr.mxu0 0.0
    %801 = vmatpush2.msra.mxu0 0.0
    %802 = vmatprep.subr.mxu0 0.0
    %803 = vmatpush2.msra.mxu0 0.0
    %804 = vmatprep.subr.mxu0 0.0
    %805 = vmatpush2.msra.mxu0 0.0
    %806 = vmatprep.subr.mxu0 0.0
    %807 = vmatpush2.msra.mxu0 0.0
    %808 = vmatprep.subr.mxu0 0.0
    %809 = vmatpush2.msra.mxu0 0.0
    %810 = vmatprep.subr.mxu0 0.0
    %811 = vmatpush2.msra.mxu0 0.0
    %812 = vmatprep.subr.mxu0 0.0
    %813 = vmatpush2.msra.mxu0 0.0
    %814 = vmatprep.subr.mxu0 0.0
    %815 = vmatpush2.msra.mxu0 0.0
    %816 = vmatprep.subr.mxu0 0.0
    %817 = vmatpush2.msra.mxu0 0.0
    %818 = vmatprep.subr.mxu0 0.0
    %819 = vmatpush2.msra.mxu0 0.0
    %820 = vmatprep.subr.mxu0 0.0
    %821 = vmatpush2.msra.mxu0 0.0
    %822 = vmatprep.subr.mxu0 0.0
    %823 = vmatpush2.msra.mxu0 0.0
    %824 = vmatprep.subr.mxu0 0.0
    %825 = vmatpush2.msra.mxu0 0.0
    %826 = vmatprep.subr.mxu0 0.0
    %827 = vmatpush2.msra.mxu0 0.0
    %828 = vmatprep.subr.mxu0 0.0
    %829 = vmatpush2.msra.mxu0 0.0
    %830 = vmatprep.subr.mxu0 0.0
    %831 = vmatpush2.msra.mxu0 0.0
    %832 = vmatprep.mubr.f32.mxu0 0.0
    %833 = vmatmul.mubr.f32.gmra.mxu0 %v763
    %v834 = vpop.f32.mrf.mxu0
    %v835 = vadd.f32 %v760, %v834
    %v836 = vpop.f32.mrf.mxu0
    %837 = vmatprep.mubr.f32.mxu0 0.0
    %838 = vmatmul.mubr.f32.gmra.mxu0 %v766
    %v839 = vpop.f32.mrf.mxu0
    %v840 = vadd.f32 %v761, %v839
    %v841 = vpop.f32.mrf.mxu0
    %842 = vdwg.mxu0
    %v843 = vmul.f32 %v835, 0.5
    %v844 = vmul.f32 %v840, 0.5
    %v845 = vmul.f32 %v835, 0.70710677
    %v846 = vmul.f32 %v840, 0.70710677
    %v847 = verf.f32.pop %v845
    %v848 = verf.f32.pop %v846
    %v849 = vadd.f32 %v847, 1.0
    %v850 = vadd.f32 %v848, 1.0
    %v851 = vmul.f32 %v843, %v849
    %v852 = vmul.f32 %v844, %v850
    %v853 = vld [vmem:[#allocation9] sm:$0xff]
    %v854 = vld [vmem:[#allocation9 + $0x8] sm:$0xff]
    %v855 = vld [vmem:[#allocation9 + $0x10] sm:$0xff]
    %v856 = vld [vmem:[#allocation9 + $0x18] sm:$0xff]
    %v857 = vld [vmem:[#allocation9 + $0x20] sm:$0xff]
    %v858 = vld [vmem:[#allocation9 + $0x28] sm:$0xff]
    %v859 = vld [vmem:[#allocation9 + $0x30] sm:$0xff]
    %v860 = vld [vmem:[#allocation9 + $0x38] sm:$0xff]
    %v861 = vld [vmem:[#allocation9 + $0x40] sm:$0xff]
    %v862 = vld [vmem:[#allocation9 + $0x48] sm:$0xff]
    %v863 = vld [vmem:[#allocation9 + $0x50] sm:$0xff]
    %v864 = vld [vmem:[#allocation9 + $0x58] sm:$0xff]
    %v865 = vld [vmem:[#allocation9 + $0x60] sm:$0xff]
    %v866 = vld [vmem:[#allocation9 + $0x68] sm:$0xff]
    %v867 = vld [vmem:[#allocation9 + $0x70] sm:$0xff]
    %v868 = vld [vmem:[#allocation9 + $0x78] sm:$0xff]
    %v869 = vld [vmem:[#allocation9 + $0x80] sm:$0xff]
    %v870 = vld [vmem:[#allocation9 + $0x88] sm:$0xff]
    %v871 = vld [vmem:[#allocation9 + $0x90] sm:$0xff]
    %v872 = vld [vmem:[#allocation9 + $0x98] sm:$0xff]
    %v873 = vld [vmem:[#allocation9 + $0xa0] sm:$0xff]
    %v874 = vld [vmem:[#allocation9 + $0xa8] sm:$0xff]
    %v875 = vld [vmem:[#allocation9 + $0xb0] sm:$0xff]
    %v876 = vld [vmem:[#allocation9 + $0xb8] sm:$0xff]
    %v877 = vld [vmem:[#allocation9 + $0xc0] sm:$0xff]
    %v878 = vld [vmem:[#allocation9 + $0xc8] sm:$0xff]
    %v879 = vld [vmem:[#allocation9 + $0xd0] sm:$0xff]
    %v880 = vld [vmem:[#allocation9 + $0xd8] sm:$0xff]
    %v881 = vld [vmem:[#allocation9 + $0xe0] sm:$0xff]
    %v882 = vld [vmem:[#allocation9 + $0xe8] sm:$0xff]
    %v883 = vld [vmem:[#allocation9 + $0xf0] sm:$0xff]
    %v884 = vld [vmem:[#allocation9 + $0xf8] sm:$0xff]
    %v885 = vld [vmem:[%s7] sm:$0x3]
    %v887 = vlaneseq
    %v888 = vshrl.u32 %v887, 7
    %v889 = vsub.s32 0, %v888
    %v890 = vrot.slane %v885, %v889
    %v891 = vlaneseq
    %v892 = vshrl.u32 %v891, 7
    %v893 = vsub.s32 1, %v892
    %v894 = vrot.slane %v885, %v893
    %897 = vmatprep.subr.mxu0 %v884
    %898 = vmatpush1.msra.mxu0 %v883
    %899 = vmatprep.subr.mxu0 %v882
    %900 = vmatpush1.msra.mxu0 %v881
    %901 = vmatprep.subr.mxu0 %v880
    %902 = vmatpush1.msra.mxu0 %v879
    %903 = vmatprep.subr.mxu0 %v878
    %904 = vmatpush1.msra.mxu0 %v877
    %905 = vmatprep.subr.mxu0 %v876
    %906 = vmatpush1.msra.mxu0 %v875
    %907 = vmatprep.subr.mxu0 %v874
    %908 = vmatpush1.msra.mxu0 %v873
    %909 = vmatprep.subr.mxu0 %v872
    %910 = vmatpush1.msra.mxu0 %v871
    %911 = vmatprep.subr.mxu0 %v870
    %912 = vmatpush1.msra.mxu0 %v869
    %913 = vmatprep.subr.mxu0 %v868
    %914 = vmatpush1.msra.mxu0 %v867
    %915 = vmatprep.subr.mxu0 %v866
    %916 = vmatpush1.msra.mxu0 %v865
    %917 = vmatprep.subr.mxu0 %v864
    %918 = vmatpush1.msra.mxu0 %v863
    %919 = vmatprep.subr.mxu0 %v862
    %920 = vmatpush1.msra.mxu0 %v861
    %921 = vmatprep.subr.mxu0 %v860
    %922 = vmatpush1.msra.mxu0 %v859
    %923 = vmatprep.subr.mxu0 %v858
    %924 = vmatpush1.msra.mxu0 %v857
    %925 = vmatprep.subr.mxu0 %v856
    %926 = vmatpush1.msra.mxu0 %v855
    %927 = vmatprep.subr.mxu0 %v854
    %928 = vmatpush1.msra.mxu0 %v853
    %929 = vmatprep.subr.mxu0 0.0
    %930 = vmatpush2.msra.mxu0 0.0
    %931 = vmatprep.subr.mxu0 0.0
    %932 = vmatpush2.msra.mxu0 0.0
    %933 = vmatprep.subr.mxu0 0.0
    %934 = vmatpush2.msra.mxu0 0.0
    %935 = vmatprep.subr.mxu0 0.0
    %936 = vmatpush2.msra.mxu0 0.0
    %937 = vmatprep.subr.mxu0 0.0
    %938 = vmatpush2.msra.mxu0 0.0
    %939 = vmatprep.subr.mxu0 0.0
    %940 = vmatpush2.msra.mxu0 0.0
    %941 = vmatprep.subr.mxu0 0.0
    %942 = vmatpush2.msra.mxu0 0.0
    %943 = vmatprep.subr.mxu0 0.0
    %944 = vmatpush2.msra.mxu0 0.0
    %945 = vmatprep.subr.mxu0 0.0
    %946 = vmatpush2.msra.mxu0 0.0
    %947 = vmatprep.subr.mxu0 0.0
    %948 = vmatpush2.msra.mxu0 0.0
    %949 = vmatprep.subr.mxu0 0.0
    %950 = vmatpush2.msra.mxu0 0.0
    %951 = vmatprep.subr.mxu0 0.0
    %952 = vmatpush2.msra.mxu0 0.0
    %953 = vmatprep.subr.mxu0 0.0
    %954 = vmatpush2.msra.mxu0 0.0
    %955 = vmatprep.subr.mxu0 0.0
    %956 = vmatpush2.msra.mxu0 0.0
    %957 = vmatprep.subr.mxu0 0.0
    %958 = vmatpush2.msra.mxu0 0.0
    %959 = vmatprep.subr.mxu0 0.0
    %960 = vmatpush2.msra.mxu0 0.0
    %961 = vmatprep.mubr.f32.mxu0 0.0
    %962 = vmatmul.mubr.f32.gmra.mxu0 %v851
    %v963 = vpop.f32.mrf.mxu0
    %v964 = vadd.f32 %v890, %v963
    %v965 = vpop.f32.mrf.mxu0
    %v966 = vadd.f32 %v894, %v965
    %967 = vmatprep.mubr.f32.mxu0 0.0
    %968 = vmatmul.mubr.f32.gmra.mxu0 %v852
    %v969 = vpop.f32.mrf.mxu0
    %v970 = vadd.f32 %v890, %v969
    %v971 = vpop.f32.mrf.mxu0
    %v972 = vadd.f32 %v894, %v971
    %973 = vdwg.mxu0
    %v974 = vxor.u32 %v966, 2147483648
    %v975 = vxor.u32 %v972, 2147483648
    %v976 = vmul.f32 %v974, 1.442695
    %v977 = vpow.pop %v976
    %v978 = vmul.f32 %v975, 1.442695
    %v979 = vpow.pop %v978
    %v980 = vadd.f32 %v977, 1.0
    %v981 = vadd.f32 %v979, 1.0
    %v982 = vrcp.pop %v980
    %v983 = vmul.f32 1.0, %v982
    %v984 = vrcp.pop %v981
    %v985 = vmul.f32 1.0, %v984
    %v986 = vmul.f32 %v964, %v983
    %v987 = vmul.f32 %v970, %v985
    %v988 = vadd.f32 %v91, %v986
    %v989 = vadd.f32 %v92, %v987
    %990 = vst [vmem:[#allocation11] sm:$0xff] %v988
    %991 = vst [vmem:[#allocation11 + $0x8] sm:$0xff] %v989
    // Predicated region
    $region58: #{fwd.1} parent=1 // pred_check
      _
    $region59: #{fwd.1} parent=1 // pred_check_branch
      %993 = sbr.rel (0) target = $region61
    $region60: #{fwd.1} parent=1 // pred_region
      %s995 = ssub.s32 256, 256
      %996 = vsyncadd [#allocation5], %s995
      %s997 = sshll.u32 [#allocation11], 4
      %s998 = int_to_ptr.vmem [resolvable:$true] %s997
      %1003 = dma.vmem_to_hbm [thread:$0]  %s998, 256, %s8, [#allocation5], 128, 128, 8
    $region61: #{fwd.1} parent=1 // pred_fallthru
      _
    // Predicated region
    $region62: #{fwd.1} parent=1 // pred_check
      _
    $region63: #{fwd.1} parent=1 // pred_check_branch
      %1005 = sbr.rel (0) target = $region65
    $region64: #{fwd.1} parent=1 // pred_region
      %1006 = dma.done [#allocation5], 256
    $region65: #{fwd.1} parent=1 // pred_fallthru
      _
    %1007 = vsyncpa [#allocation4], 1
    %1008 = vsyncpa [#allocation7], 1
    %1009 = vsyncpa [#allocation10], 1
    %1010 = vsyncpa [#allocation5], 1

</llo_original>
